<compile_context>
chip_gen: v5e
topology: v5e:2x2
jax: 0.10.0
libtpu: 0.0.40
codegen_flags: <defaults>
</compile_context>

<pallas_src>
import functools
import math

import jax
import jax.numpy as jnp
from jax.experimental import pallas as pl
from jax.experimental.pallas import tpu as pltpu


HIDDEN_DIM = 256


def _qnet_kernel(state_ref, action_ref,
                 w1_ref, b1_ref,
                 w2_ref, b2_ref,
                 w5_ref, b5_ref,
                 w3r_ref, w6r_ref, b36_ref,
                 q_ref):
    """Twin-head MLP forward for one batch tile (weights VMEM-resident)."""
    # --- layer 1, both heads fused along the output axis: ONE MXU dot ---
    xu = jnp.concatenate([state_ref[...], action_ref[...]],
                         axis=-1).astype(jnp.bfloat16)
    h = jnp.dot(xu, w1_ref[...], preferred_element_type=jnp.float32) + b1_ref[...]
    h = jnp.maximum(h, 0.0)

    h1 = h[:, :HIDDEN_DIM].astype(jnp.bfloat16)   # head-1 activations
    h2 = h[:, HIDDEN_DIM:].astype(jnp.bfloat16)   # head-2 activations

    # --- layer 2, per head (each head is already a single 256x256 MXU tile) ---
    g1 = jnp.maximum(
        jnp.dot(h1, w2_ref[...], preferred_element_type=jnp.float32) + b2_ref[...], 0.0)
    g2 = jnp.maximum(
        jnp.dot(h2, w5_ref[...], preferred_element_type=jnp.float32) + b5_ref[...], 0.0)

    # --- layer 3: output width 1 per head -> VPU multiply + row reduce (f32) ---
    q1 = jnp.sum(g1 * w3r_ref[...], axis=-1, keepdims=True)
    q2 = jnp.sum(g2 * w6r_ref[...], axis=-1, keepdims=True)
    q_ref[...] = (jnp.concatenate([q1, q2], axis=1) + b36_ref[...]).astype(q_ref.dtype)
    # TODO(synk): for very large batches (B >= ~1-4K) emit the output lane-dense
    # as (2, B) instead of (B, 2) to avoid masked vst.msk partial stores.


def pack_qnetwork_params(params):
    """Pack per-layer f32 params into the fused layout the kernel uses (do once)."""
    return {
        # Fused layer 1: both heads' weights concatenated along the output axis.
        "w1": jnp.concatenate([params["w1"], params["w4"]], axis=1).astype(jnp.bfloat16),
        "b1": jnp.concatenate([params["b1"], params["b4"]], axis=1),          # (1, 512) f32
        "w2": params["w2"].astype(jnp.bfloat16),
        "b2": params["b2"],
        "w5": params["w5"].astype(jnp.bfloat16),
        "b5": params["b5"],
        # Final 256->1 projections kept as f32 rows for the VPU/XLU path.
        "w3r": params["w3"].T,                                                # (1, 256) f32
        "w6r": params["w6"].T,                                                # (1, 256) f32
        "b36": jnp.concatenate([params["b3"], params["b6"]], axis=1),         # (1, 2)  f32
    }


@functools.partial(jax.jit, static_argnames=("block_b",))
def qnetwork_forward(state, action, packed, *, block_b=256):
    """Pallas forward.  Returns (q1, q2), each (B, 1) f32, like the torch module."""
    B, obs_dim = state.shape
    act_dim = action.shape[1]
    tb = min(block_b, B)
    grid = (pl.cdiv(B, tb),)

    row = lambda i: (i, 0)      # batch-tiled arrays
    const = lambda i: (0, 0)    # weights/biases: constant index -> VMEM-resident

    in_specs = [
        pl.BlockSpec((tb, obs_dim), row),
        pl.BlockSpec((tb, act_dim), row),
        pl.BlockSpec(packed["w1"].shape, const),
        pl.BlockSpec(packed["b1"].shape, const),
        pl.BlockSpec(packed["w2"].shape, const),
        pl.BlockSpec(packed["b2"].shape, const),
        pl.BlockSpec(packed["w5"].shape, const),
        pl.BlockSpec(packed["b5"].shape, const),
        pl.BlockSpec(packed["w3r"].shape, const),
        pl.BlockSpec(packed["w6r"].shape, const),
        pl.BlockSpec(packed["b36"].shape, const),
    ]
    out_spec = pl.BlockSpec((tb, 2), row)

    q = pl.pallas_call(
        _qnet_kernel,
        out_shape=jax.ShapeDtypeStruct((B, 2), jnp.float32),
        grid=grid,
        in_specs=in_specs,
        out_specs=out_spec,
        compiler_params=pltpu.CompilerParams(
            dimension_semantics=("parallel",)),   # batch tiles shard across TCs on v7x
    )(state, action,
      packed["w1"], packed["b1"],
      packed["w2"], packed["b2"],
      packed["w5"], packed["b5"],
      packed["w3r"], packed["w6r"], packed["b36"])

    # Slicing stays inside the jit so it fuses with the output copy.
    return q[:, 0:1], q[:, 1:2]


def _xavier_uniform(key, fan_in, fan_out, gain=1.0):
    """torch.nn.init.xavier_uniform_ (gain=1), returned as (fan_in, fan_out)."""
    bound = gain * math.sqrt(6.0 / (fan_in + fan_out))
    return jax.random.uniform(key, (fan_in, fan_out), jnp.float32,
                              minval=-bound, maxval=bound)


def init_qnetwork_params(key, input_dim, hidden_dim=HIDDEN_DIM):
    keys = jax.random.split(key, 6)
    return {
        "w1": _xavier_uniform(keys[0], input_dim, hidden_dim),
        "b1": jnp.zeros((1, hidden_dim), jnp.float32),
        "w2": _xavier_uniform(keys[1], hidden_dim, hidden_dim),
        "b2": jnp.zeros((1, hidden_dim), jnp.float32),
        "w3": _xavier_uniform(keys[2], hidden_dim, 1),
        "b3": jnp.zeros((1, 1), jnp.float32),
        "w4": _xavier_uniform(keys[3], input_dim, hidden_dim),
        "b4": jnp.zeros((1, hidden_dim), jnp.float32),
        "w5": _xavier_uniform(keys[4], hidden_dim, hidden_dim),
        "b5": jnp.zeros((1, hidden_dim), jnp.float32),
        "w6": _xavier_uniform(keys[5], hidden_dim, 1),
        "b6": jnp.zeros((1, 1), jnp.float32),
    }


def _reference_forward_f32(state, action, params):
    """Pure-JAX f32 reference matching the PyTorch forward (semantics check)."""
    xu = jnp.concatenate([state, action], axis=1)
    h = jax.nn.relu(xu @ params["w1"] + params["b1"])
    h = jax.nn.relu(h @ params["w2"] + params["b2"])
    q1 = h @ params["w3"] + params["b3"]
    g = jax.nn.relu(xu @ params["w4"] + params["b4"])
    g = jax.nn.relu(g @ params["w5"] + params["b5"])
    q2 = g @ params["w6"] + params["b6"]
    return q1, q2


def _reference_forward_bf16(state, action, packed):
    """Pure-JAX reference using the exact packed arithmetic of the kernel."""
    xu = jnp.concatenate([state, action], axis=1).astype(jnp.bfloat16)
    h = jnp.maximum(
        jnp.dot(xu, packed["w1"], preferred_element_type=jnp.float32) + packed["b1"], 0.0)
    h1 = h[:, :HIDDEN_DIM].astype(jnp.bfloat16)
    h2 = h[:, HIDDEN_DIM:].astype(jnp.bfloat16)
    g1 = jnp.maximum(
        jnp.dot(h1, packed["w2"], preferred_element_type=jnp.float32) + packed["b2"], 0.0)
    g2 = jnp.maximum(
        jnp.dot(h2, packed["w5"], preferred_element_type=jnp.float32) + packed["b5"], 0.0)
    q1 = jnp.sum(g1 * packed["w3r"], axis=-1, keepdims=True)
    q2 = jnp.sum(g2 * packed["w6r"], axis=-1, keepdims=True)
    q = jnp.concatenate([q1, q2], axis=1) + packed["b36"]
    return q[:, 0:1], q[:, 1:2]


if __name__ == "__main__":
    # Small shapes implied by the module: obs_dim=12, action_dim=4, hidden=256.
    batch = 64
    obs_dim = 12
    action_dim = 4
    input_dim = obs_dim + action_dim

    root = jax.random.PRNGKey(0)
    k_state, k_action, k_params = jax.random.split(root, 3)

    state = jax.random.normal(k_state, (batch, obs_dim), jnp.float32)
    action = jax.random.normal(k_action, (batch, action_dim), jnp.float32)
    params = init_qnetwork_params(k_params, input_dim)
    packed = pack_qnetwork_params(params)

    # Single-tile path (default block_b > B).
    q1, q2 = qnetwork_forward(state, action, packed)
    q1 = jax.block_until_ready(q1)
    q2 = jax.block_until_ready(q2)
    assert q1.shape == (batch, 1) and q2.shape == (batch, 1)

    # Multi-tile path (exercises the batch grid / resident-weight BlockSpecs).
    t1, t2 = qnetwork_forward(state, action, packed, block_b=16)
    t1 = jax.block_until_ready(t1)
    t2 = jax.block_until_ready(t2)

    # Tight check against a reference that uses the identical mixed-precision math.
    b1, b2 = _reference_forward_bf16(state, action, packed)
    assert jnp.allclose(q1, b1, atol=1e-2, rtol=1e-2)
    assert jnp.allclose(q2, b2, atol=1e-2, rtol=1e-2)
    assert jnp.allclose(t1, b1, atol=1e-2, rtol=1e-2)
    assert jnp.allclose(t2, b2, atol=1e-2, rtol=1e-2)

    # Loose check against the full-f32 PyTorch-equivalent forward
    # (bf16 layer-1/2 weights introduce ~1% numerical differences).
    r1, r2 = _reference_forward_f32(state, action, params)
    assert jnp.allclose(q1, r1, atol=1e-1, rtol=1e-1)
    assert jnp.allclose(q2, r2, atol=1e-1, rtol=1e-1)

    print("KERNEL_OK")
</pallas_src>

<mosaic_0001>
module attributes {stable_mosaic.version = 11 : i64} {
  func.func @_qnet_kernel(%arg0: i32, %arg1: memref<64x12xf32, #tpu.memory_space<vmem>>, %arg2: memref<64x4xf32, #tpu.memory_space<vmem>>, %arg3: memref<16x512xbf16, #tpu.memory_space<vmem>>, %arg4: memref<1x512xf32, #tpu.memory_space<vmem>>, %arg5: memref<256x256xbf16, #tpu.memory_space<vmem>>, %arg6: memref<1x256xf32, #tpu.memory_space<vmem>>, %arg7: memref<256x256xbf16, #tpu.memory_space<vmem>>, %arg8: memref<1x256xf32, #tpu.memory_space<vmem>>, %arg9: memref<1x256xf32, #tpu.memory_space<vmem>>, %arg10: memref<1x256xf32, #tpu.memory_space<vmem>>, %arg11: memref<1x2xf32, #tpu.memory_space<vmem>>, %arg12: memref<64x2xf32, #tpu.memory_space<vmem>>) attributes {dimension_semantics = [#tpu.dimension_semantics<parallel>], iteration_bounds = array<i64: 1>, scalar_prefetch = 0 : i64, scratch_operands = 0 : i64, tpu.core_type = #tpu.core_type<tc>, window_params = [{transform_indices = @transform_0, window_bounds = array<i64: 64, 12>}, {transform_indices = @transform_1, window_bounds = array<i64: 64, 4>}, {pipeline_mode = #tpu.pipeline_mode<synchronous>, transform_indices = @transform_2, window_bounds = array<i64: 16, 512>}, {pipeline_mode = #tpu.pipeline_mode<synchronous>, transform_indices = @transform_3, window_bounds = array<i64: 1, 512>}, {pipeline_mode = #tpu.pipeline_mode<synchronous>, transform_indices = @transform_4, window_bounds = array<i64: 256, 256>}, {pipeline_mode = #tpu.pipeline_mode<synchronous>, transform_indices = @transform_5, window_bounds = array<i64: 1, 256>}, {pipeline_mode = #tpu.pipeline_mode<synchronous>, transform_indices = @transform_6, window_bounds = array<i64: 256, 256>}, {pipeline_mode = #tpu.pipeline_mode<synchronous>, transform_indices = @transform_7, window_bounds = array<i64: 1, 256>}, {pipeline_mode = #tpu.pipeline_mode<synchronous>, transform_indices = @transform_8, window_bounds = array<i64: 1, 256>}, {pipeline_mode = #tpu.pipeline_mode<synchronous>, transform_indices = @transform_9, window_bounds = array<i64: 1, 256>}, {pipeline_mode = #tpu.pipeline_mode<synchronous>, transform_indices = @transform_10, window_bounds = array<i64: 1, 2>}, {transform_indices = @transform_11, window_bounds = array<i64: 64, 2>}]} {
    %c0 = arith.constant 0 : index
    %c0_0 = arith.constant 0 : index
    %0 = vector.load %arg1[%c0, %c0_0] : memref<64x12xf32, #tpu.memory_space<vmem>>, vector<64x12xf32>
    %c0_1 = arith.constant 0 : index
    %c0_2 = arith.constant 0 : index
    %1 = vector.load %arg2[%c0_1, %c0_2] : memref<64x4xf32, #tpu.memory_space<vmem>>, vector<64x4xf32>
    %2 = tpu.concatenate %0, %1 in 1 : vector<64x12xf32>, vector<64x4xf32> -> vector<64x16xf32>
    %3 = arith.truncf %2 : vector<64x16xf32> to vector<64x16xbf16>
    %c0_3 = arith.constant 0 : index
    %c0_4 = arith.constant 0 : index
    %4 = vector.load %arg3[%c0_3, %c0_4] : memref<16x512xbf16, #tpu.memory_space<vmem>>, vector<16x512xbf16>
    %cst = arith.constant dense<0.000000e+00> : vector<64x512xf32>
    %5 = tpu.matmul %3, %4, %cst {dimension_numbers = #tpu.dot_dimension_numbers<[1], [0], [0], [1], [0, 0, 1, 1], [], []>} : vector<64x16xbf16>, vector<16x512xbf16>, vector<64x512xf32> -> vector<64x512xf32>
    %c0_5 = arith.constant 0 : index
    %c0_6 = arith.constant 0 : index
    %6 = vector.load %arg4[%c0_5, %c0_6] : memref<1x512xf32, #tpu.memory_space<vmem>>, vector<1x512xf32>
    %7 = vector.broadcast %6 : vector<1x512xf32> to vector<64x512xf32>
    %8 = arith.addf %5, %7 : vector<64x512xf32>
    %cst_7 = arith.constant 0.000000e+00 : f32
    %9 = vector.broadcast %cst_7 : f32 to vector<64x512xf32>
    %10 = arith.maximumf %8, %9 : vector<64x512xf32>
    %11 = vector.extract_strided_slice %10 {offsets = [0, 0], sizes = [64, 256], strides = [1, 1]} : vector<64x512xf32> to vector<64x256xf32>
    %12 = arith.truncf %11 : vector<64x256xf32> to vector<64x256xbf16>
    %13 = vector.extract_strided_slice %10 {offsets = [0, 256], sizes = [64, 256], strides = [1, 1]} : vector<64x512xf32> to vector<64x256xf32>
    %14 = arith.truncf %13 : vector<64x256xf32> to vector<64x256xbf16>
    %c0_8 = arith.constant 0 : index
    %c0_9 = arith.constant 0 : index
    %15 = vector.load %arg5[%c0_8, %c0_9] : memref<256x256xbf16, #tpu.memory_space<vmem>>, vector<256x256xbf16>
    %cst_10 = arith.constant dense<0.000000e+00> : vector<64x256xf32>
    %16 = tpu.matmul %12, %15, %cst_10 {dimension_numbers = #tpu.dot_dimension_numbers<[1], [0], [0], [1], [0, 0, 1, 1], [], []>} : vector<64x256xbf16>, vector<256x256xbf16>, vector<64x256xf32> -> vector<64x256xf32>
    %c0_11 = arith.constant 0 : index
    %c0_12 = arith.constant 0 : index
    %17 = vector.load %arg6[%c0_11, %c0_12] : memref<1x256xf32, #tpu.memory_space<vmem>>, vector<1x256xf32>
    %18 = vector.broadcast %17 : vector<1x256xf32> to vector<64x256xf32>
    %19 = arith.addf %16, %18 : vector<64x256xf32>
    %cst_13 = arith.constant 0.000000e+00 : f32
    %20 = vector.broadcast %cst_13 : f32 to vector<64x256xf32>
    %21 = arith.maximumf %19, %20 : vector<64x256xf32>
    %c0_14 = arith.constant 0 : index
    %c0_15 = arith.constant 0 : index
    %22 = vector.load %arg7[%c0_14, %c0_15] : memref<256x256xbf16, #tpu.memory_space<vmem>>, vector<256x256xbf16>
    %cst_16 = arith.constant dense<0.000000e+00> : vector<64x256xf32>
    %23 = tpu.matmul %14, %22, %cst_16 {dimension_numbers = #tpu.dot_dimension_numbers<[1], [0], [0], [1], [0, 0, 1, 1], [], []>} : vector<64x256xbf16>, vector<256x256xbf16>, vector<64x256xf32> -> vector<64x256xf32>
    %c0_17 = arith.constant 0 : index
    %c0_18 = arith.constant 0 : index
    %24 = vector.load %arg8[%c0_17, %c0_18] : memref<1x256xf32, #tpu.memory_space<vmem>>, vector<1x256xf32>
    %25 = vector.broadcast %24 : vector<1x256xf32> to vector<64x256xf32>
    %26 = arith.addf %23, %25 : vector<64x256xf32>
    %cst_19 = arith.constant 0.000000e+00 : f32
    %27 = vector.broadcast %cst_19 : f32 to vector<64x256xf32>
    %28 = arith.maximumf %26, %27 : vector<64x256xf32>
    %c0_20 = arith.constant 0 : index
    %c0_21 = arith.constant 0 : index
    %29 = vector.load %arg9[%c0_20, %c0_21] : memref<1x256xf32, #tpu.memory_space<vmem>>, vector<1x256xf32>
    %30 = vector.broadcast %29 : vector<1x256xf32> to vector<64x256xf32>
    %31 = arith.mulf %21, %30 : vector<64x256xf32>
    %cst_22 = arith.constant dense<0.000000e+00> : vector<64xf32>
    %32 = vector.multi_reduction <add>, %31, %cst_22 [1] : vector<64x256xf32> to vector<64xf32>
    %33 = vector.shape_cast %32 : vector<64xf32> to vector<64x1xf32>
    %c0_23 = arith.constant 0 : index
    %c0_24 = arith.constant 0 : index
    %34 = vector.load %arg10[%c0_23, %c0_24] : memref<1x256xf32, #tpu.memory_space<vmem>>, vector<1x256xf32>
    %35 = vector.broadcast %34 : vector<1x256xf32> to vector<64x256xf32>
    %36 = arith.mulf %28, %35 : vector<64x256xf32>
    %cst_25 = arith.constant dense<0.000000e+00> : vector<64xf32>
    %37 = vector.multi_reduction <add>, %36, %cst_25 [1] : vector<64x256xf32> to vector<64xf32>
    %38 = vector.shape_cast %37 : vector<64xf32> to vector<64x1xf32>
    %39 = tpu.concatenate %33, %38 in 1 : vector<64x1xf32>, vector<64x1xf32> -> vector<64x2xf32>
    %c0_26 = arith.constant 0 : index
    %c0_27 = arith.constant 0 : index
    %40 = vector.load %arg11[%c0_26, %c0_27] : memref<1x2xf32, #tpu.memory_space<vmem>>, vector<1x2xf32>
    %41 = vector.broadcast %40 : vector<1x2xf32> to vector<64x2xf32>
    %42 = arith.addf %39, %41 : vector<64x2xf32>
    %c0_28 = arith.constant 0 : index
    %c0_29 = arith.constant 0 : index
    %43 = vector.load %arg12[%c0_28, %c0_29] : memref<64x2xf32, #tpu.memory_space<vmem>>, vector<64x2xf32>
    tpu.vector_store %arg12[%c0_28, %c0_29], %42 {strides = array<i32>} : memref<64x2xf32, #tpu.memory_space<vmem>>, vector<64x2xf32>,
    return
  }
  func.func @transform_0(%arg0: i32) -> (i32, i32) {
    %c0_i32 = arith.constant 0 : i32
    %c0_i32_0 = arith.constant 0 : i32
    return %arg0, %c0_i32 : i32, i32
  }
  func.func @transform_1(%arg0: i32) -> (i32, i32) {
    %c0_i32 = arith.constant 0 : i32
    %c0_i32_0 = arith.constant 0 : i32
    return %arg0, %c0_i32 : i32, i32
  }
  func.func @transform_2(%arg0: i32) -> (i32, i32) {
    %c0_i32 = arith.constant 0 : i32
    %c0_i32_0 = arith.constant 0 : i32
    %c0_i32_1 = arith.constant 0 : i32
    return %c0_i32, %c0_i32_0 : i32, i32
  }
  func.func @transform_3(%arg0: i32) -> (i32, i32) {
    %c0_i32 = arith.constant 0 : i32
    %c0_i32_0 = arith.constant 0 : i32
    %c0_i32_1 = arith.constant 0 : i32
    return %c0_i32, %c0_i32_0 : i32, i32
  }
  func.func @transform_4(%arg0: i32) -> (i32, i32) {
    %c0_i32 = arith.constant 0 : i32
    %c0_i32_0 = arith.constant 0 : i32
    %c0_i32_1 = arith.constant 0 : i32
    return %c0_i32, %c0_i32_0 : i32, i32
  }
  func.func @transform_5(%arg0: i32) -> (i32, i32) {
    %c0_i32 = arith.constant 0 : i32
    %c0_i32_0 = arith.constant 0 : i32
    %c0_i32_1 = arith.constant 0 : i32
    return %c0_i32, %c0_i32_0 : i32, i32
  }
  func.func @transform_6(%arg0: i32) -> (i32, i32) {
    %c0_i32 = arith.constant 0 : i32
    %c0_i32_0 = arith.constant 0 : i32
    %c0_i32_1 = arith.constant 0 : i32
    return %c0_i32, %c0_i32_0 : i32, i32
  }
  func.func @transform_7(%arg0: i32) -> (i32, i32) {
    %c0_i32 = arith.constant 0 : i32
    %c0_i32_0 = arith.constant 0 : i32
    %c0_i32_1 = arith.constant 0 : i32
    return %c0_i32, %c0_i32_0 : i32, i32
  }
  func.func @transform_8(%arg0: i32) -> (i32, i32) {
    %c0_i32 = arith.constant 0 : i32
    %c0_i32_0 = arith.constant 0 : i32
    %c0_i32_1 = arith.constant 0 : i32
    return %c0_i32, %c0_i32_0 : i32, i32
  }
  func.func @transform_9(%arg0: i32) -> (i32, i32) {
    %c0_i32 = arith.constant 0 : i32
    %c0_i32_0 = arith.constant 0 : i32
    %c0_i32_1 = arith.constant 0 : i32
    return %c0_i32, %c0_i32_0 : i32, i32
  }
  func.func @transform_10(%arg0: i32) -> (i32, i32) {
    %c0_i32 = arith.constant 0 : i32
    %c0_i32_0 = arith.constant 0 : i32
    %c0_i32_1 = arith.constant 0 : i32
    return %c0_i32, %c0_i32_0 : i32, i32
  }
  func.func @transform_11(%arg0: i32) -> (i32, i32) {
    %c0_i32 = arith.constant 0 : i32
    %c0_i32_0 = arith.constant 0 : i32
    return %arg0, %c0_i32 : i32, i32
  }
}

</mosaic_0001>

<llo_original>
// kernel: qnetwork_forward.1
$region0: #{qnetwork_forward.1}
  #allocation0 [shape = 'u32[]', space=smem, size = 0x4, offset = 0x4, fixed_abs, tag = 'smem constant byte address 0x4 - core index']
  #allocation1 [shape = 'u32[72,128]{1,0:T(1,128)}', space=vmem, size = 0x9000, scoped, tag = 'internal scratch']
  %s0 = inlined_call_operand.vmem [shape: f32[64,12], index: 0, kind: input, shape index: {}]
  %s1 = inlined_call_operand.vmem [shape: f32[64,4], index: 1, kind: input, shape index: {}]
  %s2 = inlined_call_operand.vmem [shape: bf16[16,512], index: 2, kind: input, shape index: {}]
  %s3 = inlined_call_operand.vmem [shape: f32[1,512], index: 3, kind: input, shape index: {}]
  %s4 = inlined_call_operand.hbm [shape: bf16[256,256], index: 4, kind: input, shape index: {}]
  %s5 = inlined_call_operand.vmem [shape: f32[1,256], index: 5, kind: input, shape index: {}]
  %s6 = inlined_call_operand.hbm [shape: bf16[256,256], index: 6, kind: input, shape index: {}]
  %s7 = inlined_call_operand.vmem [shape: f32[1,256], index: 7, kind: input, shape index: {}]
  %s8 = inlined_call_operand.vmem [shape: f32[1,256], index: 8, kind: input, shape index: {}]
  %s9 = inlined_call_operand.vmem [shape: f32[1,256], index: 9, kind: input, shape index: {}]
  %s10 = inlined_call_operand.vmem [shape: f32[1,2], index: 10, kind: input, shape index: {}]
  %s11 = inlined_call_operand.vmem [shape: f32[64,2], index: 11, kind: output, shape index: {}]
  %s12 = sld [smem:[#allocation0]]
  $region62: #{qnetwork_forward.1} parent=0
    _
  %s14 = ssub.s32 1, %s12
  %s15 = scalar_select 0, %s14, %s12
  $region1: #{qnetwork_forward.1} parent=0
    #allocation2 [shape = 'u8[131072]{0}', space=vmem, size = 0x20000, scoped, tag = 'input window, operand 4, single buffered']
    #allocation3 [shape = 's32[1]{0}', space=sflag, size = 0x4, scoped, tag = 'scoped memory for qnetwork_forward.1']
    #allocation4 [shape = 'u8[131072]{0}', space=vmem, size = 0x20000, scoped, tag = 'input window, operand 6, single buffered']
    #allocation5 [shape = 's32[1]{0}', space=sflag, size = 0x4, scoped, tag = 'scoped memory for qnetwork_forward.1']
    %16 = vsyncpa [#allocation3], 0
    %17 = vsyncpa [#allocation5], 0
    // Predicated region
    $region2: #{qnetwork_forward.1} parent=1 // pred_check
      _
    $region3: #{qnetwork_forward.1} parent=1 // pred_check_branch
      %19 = sbr.rel (0) target = $region5
    $region4: #{qnetwork_forward.1} parent=1 // pred_region
      _
    $region5: #{qnetwork_forward.1} parent=1 // pred_fallthru
      _
    // Predicated region
    $region6: #{qnetwork_forward.1} parent=1 // pred_check
      _
    $region7: #{qnetwork_forward.1} parent=1 // pred_check_branch
      %21 = sbr.rel (0) target = $region9
    $region8: #{qnetwork_forward.1} parent=1 // pred_region
      _
    $region9: #{qnetwork_forward.1} parent=1 // pred_fallthru
      _
    // Predicated region
    $region10: #{qnetwork_forward.1} parent=1 // pred_check
      _
    $region11: #{qnetwork_forward.1} parent=1 // pred_check_branch
      %23 = sbr.rel (0) target = $region13
    $region12: #{qnetwork_forward.1} parent=1 // pred_region
      _
    $region13: #{qnetwork_forward.1} parent=1 // pred_fallthru
      _
    // Predicated region
    $region14: #{qnetwork_forward.1} parent=1 // pred_check
      _
    $region15: #{qnetwork_forward.1} parent=1 // pred_check_branch
      %25 = sbr.rel (0) target = $region17
    $region16: #{qnetwork_forward.1} parent=1 // pred_region
      _
    $region17: #{qnetwork_forward.1} parent=1 // pred_fallthru
      _
    // Predicated region
    $region18: #{qnetwork_forward.1} parent=1 // pred_check
      _
    $region19: #{qnetwork_forward.1} parent=1 // pred_check_branch
      %27 = sbr.rel (0) target = $region21
    $region20: #{qnetwork_forward.1} parent=1 // pred_region
      %29 = vsyncadd [#allocation3], 0
      %s30 = sshll.u32 %s4, 4
      %s31 = int_to_ptr.hbm [resolvable:$true] %s30
      %s32 = sshll.u32 [#allocation2], 4
      %s33 = int_to_ptr.vmem [resolvable:$true] %s32
      %38 = dma.hbm_to_vmem [thread:$0]  %s31, 4096, %s33, [#allocation3], 128, 128, 8
    $region21: #{qnetwork_forward.1} parent=1 // pred_fallthru
      _
    // Predicated region
    $region22: #{qnetwork_forward.1} parent=1 // pred_check
      _
    $region23: #{qnetwork_forward.1} parent=1 // pred_check_branch
      %40 = sbr.rel (0) target = $region25
    $region24: #{qnetwork_forward.1} parent=1 // pred_region
      _
    $region25: #{qnetwork_forward.1} parent=1 // pred_fallthru
      _
    // Predicated region
    $region26: #{qnetwork_forward.1} parent=1 // pred_check
      _
    $region27: #{qnetwork_forward.1} parent=1 // pred_check_branch
      %42 = sbr.rel (0) target = $region29
    $region28: #{qnetwork_forward.1} parent=1 // pred_region
      %44 = vsyncadd [#allocation5], 0
      %s45 = sshll.u32 %s6, 4
      %s46 = int_to_ptr.hbm [resolvable:$true] %s45
      %s47 = sshll.u32 [#allocation4], 4
      %s48 = int_to_ptr.vmem [resolvable:$true] %s47
      %53 = dma.hbm_to_vmem [thread:$0]  %s46, 4096, %s48, [#allocation5], 128, 128, 8
    $region29: #{qnetwork_forward.1} parent=1 // pred_fallthru
      _
    // Predicated region
    $region30: #{qnetwork_forward.1} parent=1 // pred_check
      _
    $region31: #{qnetwork_forward.1} parent=1 // pred_check_branch
      %55 = sbr.rel (0) target = $region33
    $region32: #{qnetwork_forward.1} parent=1 // pred_region
      _
    $region33: #{qnetwork_forward.1} parent=1 // pred_fallthru
      _
    // Predicated region
    $region34: #{qnetwork_forward.1} parent=1 // pred_check
      _
    $region35: #{qnetwork_forward.1} parent=1 // pred_check_branch
      %57 = sbr.rel (0) target = $region37
    $region36: #{qnetwork_forward.1} parent=1 // pred_region
      _
    $region37: #{qnetwork_forward.1} parent=1 // pred_fallthru
      _
    // Predicated region
    $region38: #{qnetwork_forward.1} parent=1 // pred_check
      _
    $region39: #{qnetwork_forward.1} parent=1 // pred_check_branch
      %59 = sbr.rel (0) target = $region41
    $region40: #{qnetwork_forward.1} parent=1 // pred_region
      _
    $region41: #{qnetwork_forward.1} parent=1 // pred_fallthru
      _
    // Predicated region
    $region42: #{qnetwork_forward.1} parent=1 // pred_check
      _
    $region43: #{qnetwork_forward.1} parent=1 // pred_check_branch
      %61 = sbr.rel (0) target = $region45
    $region44: #{qnetwork_forward.1} parent=1 // pred_region
      _
    $region45: #{qnetwork_forward.1} parent=1 // pred_fallthru
      _
    // Predicated region
    $region46: #{qnetwork_forward.1} parent=1 // pred_check
      _
    $region47: #{qnetwork_forward.1} parent=1 // pred_check_branch
      %63 = sbr.rel (0) target = $region49
    $region48: #{qnetwork_forward.1} parent=1 // pred_region
      %65 = dma.done [#allocation3], 4096
    $region49: #{qnetwork_forward.1} parent=1 // pred_fallthru
      _
    // Predicated region
    $region50: #{qnetwork_forward.1} parent=1 // pred_check
      _
    $region51: #{qnetwork_forward.1} parent=1 // pred_check_branch
      %67 = sbr.rel (0) target = $region53
    $region52: #{qnetwork_forward.1} parent=1 // pred_region
      %69 = dma.done [#allocation5], 4096
    $region53: #{qnetwork_forward.1} parent=1 // pred_fallthru
      _
    %v71 = vld [vmem:[%s0] sm:$0xff]
    %v72 = vld [vmem:[%s0 + $0x8] sm:$0xff]
    %v73 = vld [vmem:[%s0 + $0x10] sm:$0xff]
    %v74 = vld [vmem:[%s0 + $0x18] sm:$0xff]
    %v75 = vld [vmem:[%s0 + $0x20] sm:$0xff]
    %v76 = vld [vmem:[%s0 + $0x28] sm:$0xff]
    %v77 = vld [vmem:[%s0 + $0x30] sm:$0xff]
    %v78 = vld [vmem:[%s0 + $0x38] sm:$0xff]
    %v79 = vld [vmem:[%s1] sm:$0xff]
    %v80 = vld [vmem:[%s1 + $0x8] sm:$0xff]
    %v81 = vld [vmem:[%s1 + $0x10] sm:$0xff]
    %v82 = vld [vmem:[%s1 + $0x18] sm:$0xff]
    %v83 = vld [vmem:[%s1 + $0x20] sm:$0xff]
    %v84 = vld [vmem:[%s1 + $0x28] sm:$0xff]
    %v85 = vld [vmem:[%s1 + $0x30] sm:$0xff]
    %v86 = vld [vmem:[%s1 + $0x38] sm:$0xff]
    %95 = vrot.lane.b32.xlu0 %v79, 12
    %v96 = vpop.permute.xlu0 %95
    %97 = vrot.lane.b32.xlu0 %v80, 12
    %v98 = vpop.permute.xlu0 %97
    %99 = vrot.lane.b32.xlu0 %v81, 12
    %v100 = vpop.permute.xlu0 %99
    %101 = vrot.lane.b32.xlu0 %v82, 12
    %v102 = vpop.permute.xlu0 %101
    %103 = vrot.lane.b32.xlu0 %v83, 12
    %v104 = vpop.permute.xlu0 %103
    %105 = vrot.lane.b32.xlu0 %v84, 12
    %v106 = vpop.permute.xlu0 %105
    %107 = vrot.lane.b32.xlu0 %v85, 12
    %v108 = vpop.permute.xlu0 %107
    %109 = vrot.lane.b32.xlu0 %v86, 12
    %v110 = vpop.permute.xlu0 %109
    %vm119 = vcmask 97280
    %v120 = vsel %vm119, %v71, %v96
    %v121 = vsel %vm119, %v72, %v98
    %v122 = vsel %vm119, %v73, %v100
    %v123 = vsel %vm119, %v74, %v102
    %v124 = vsel %vm119, %v75, %v104
    %v125 = vsel %vm119, %v76, %v106
    %v126 = vsel %vm119, %v77, %v108
    %v127 = vsel %vm119, %v78, %v110
    %v128 = vpack.c.bf16 %v121, %v120
    %v129 = vpack.c.bf16 %v123, %v122
    %v130 = vpack.c.bf16 %v125, %v124
    %v131 = vpack.c.bf16 %v127, %v126
    %v132 = vld [vmem:[%s2] sm:$0xff]
    %v133 = vld [vmem:[%s2 + $0x8] sm:$0xff]
    %v134 = vld [vmem:[%s2 + $0x10] sm:$0xff]
    %v135 = vld [vmem:[%s2 + $0x18] sm:$0xff]
    %v136 = vld [vmem:[%s3] sm:$0xf]
    %v138 = vperm.slane %v136, 0
    %v139 = vperm.slane %v136, 1
    %v140 = vperm.slane %v136, 2
    %v141 = vperm.slane %v136, 3
    %v150 = vunpack.c.l.b16 %v132
    %v151 = vunpack.c.h.b16 %v132
    %v152 = vunpack.c.l.b16 %v133
    %v153 = vunpack.c.h.b16 %v133
    %v154 = vunpack.c.l.b16 %v134
    %v155 = vunpack.c.h.b16 %v134
    %v156 = vunpack.c.l.b16 %v135
    %v157 = vunpack.c.h.b16 %v135
    %v158 = vpack.c.b16 %v154, %v150
    %v159 = vpack.c.b16 %v155, %v151
    %v160 = vpack.c.b16 %v156, %v152
    %v161 = vpack.c.b16 %v157, %v153
    %vm166 = vcmask 130048
    %v168 = vsel %vm166, %v128, 0
    %v171 = vsel %vm166, %v129, 0
    %v174 = vsel %vm166, %v130, 0
    %v177 = vsel %vm166, %v131, 0
    %179 = vmatpush.bf16.msra.mxu0 0
    %180 = vmatpush.bf16.msra.mxu0 0
    %181 = vmatpush.bf16.msra.mxu0 0
    %182 = vmatpush.bf16.msra.mxu0 0
    %183 = vmatpush.bf16.msra.mxu0 0
    %184 = vmatpush.bf16.msra.mxu0 0
    %185 = vmatpush.bf16.msra.mxu0 0
    %186 = vmatpush.bf16.msra.mxu0 %v158
    %187 = vmatmul.bf16.gmra.mxu0 %v168
    %v188 = vpop.f32.mrf.mxu0
    %v189 = vadd.f32 %v138, %v188
    %v190 = vpop.f32.mrf.mxu0
    %v191 = vadd.f32 %v138, %v190
    %192 = vmatmul.bf16.gmra.mxu0 %v171
    %v193 = vpop.f32.mrf.mxu0
    %v194 = vadd.f32 %v138, %v193
    %v195 = vpop.f32.mrf.mxu0
    %v196 = vadd.f32 %v138, %v195
    %197 = vmatmul.bf16.gmra.mxu0 %v174
    %v198 = vpop.f32.mrf.mxu0
    %v199 = vadd.f32 %v138, %v198
    %v200 = vpop.f32.mrf.mxu0
    %v201 = vadd.f32 %v138, %v200
    %202 = vmatmul.bf16.gmra.mxu0 %v177
    %v203 = vpop.f32.mrf.mxu0
    %v204 = vadd.f32 %v138, %v203
    %v205 = vpop.f32.mrf.mxu0
    %v206 = vadd.f32 %v138, %v205
    %207 = vdwg.mxu0
    %208 = vmatpush.bf16.msra.mxu0 0
    %209 = vmatpush.bf16.msra.mxu0 0
    %210 = vmatpush.bf16.msra.mxu0 0
    %211 = vmatpush.bf16.msra.mxu0 0
    %212 = vmatpush.bf16.msra.mxu0 0
    %213 = vmatpush.bf16.msra.mxu0 0
    %214 = vmatpush.bf16.msra.mxu0 0
    %215 = vmatpush.bf16.msra.mxu0 %v159
    %216 = vmatmul.bf16.gmra.mxu0 %v168
    %v217 = vpop.f32.mrf.mxu0
    %v218 = vadd.f32 %v139, %v217
    %v219 = vpop.f32.mrf.mxu0
    %v220 = vadd.f32 %v139, %v219
    %221 = vmatmul.bf16.gmra.mxu0 %v171
    %v222 = vpop.f32.mrf.mxu0
    %v223 = vadd.f32 %v139, %v222
    %v224 = vpop.f32.mrf.mxu0
    %v225 = vadd.f32 %v139, %v224
    %226 = vmatmul.bf16.gmra.mxu0 %v174
    %v227 = vpop.f32.mrf.mxu0
    %v228 = vadd.f32 %v139, %v227
    %v229 = vpop.f32.mrf.mxu0
    %v230 = vadd.f32 %v139, %v229
    %231 = vmatmul.bf16.gmra.mxu0 %v177
    %v232 = vpop.f32.mrf.mxu0
    %v233 = vadd.f32 %v139, %v232
    %v234 = vpop.f32.mrf.mxu0
    %v235 = vadd.f32 %v139, %v234
    %236 = vdwg.mxu0
    %237 = vmatpush.bf16.msra.mxu0 0
    %238 = vmatpush.bf16.msra.mxu0 0
    %239 = vmatpush.bf16.msra.mxu0 0
    %240 = vmatpush.bf16.msra.mxu0 0
    %241 = vmatpush.bf16.msra.mxu0 0
    %242 = vmatpush.bf16.msra.mxu0 0
    %243 = vmatpush.bf16.msra.mxu0 0
    %244 = vmatpush.bf16.msra.mxu0 %v160
    %245 = vmatmul.bf16.gmra.mxu0 %v168
    %v246 = vpop.f32.mrf.mxu0
    %v247 = vadd.f32 %v140, %v246
    %v248 = vpop.f32.mrf.mxu0
    %v249 = vadd.f32 %v140, %v248
    %250 = vmatmul.bf16.gmra.mxu0 %v171
    %v251 = vpop.f32.mrf.mxu0
    %v252 = vadd.f32 %v140, %v251
    %v253 = vpop.f32.mrf.mxu0
    %v254 = vadd.f32 %v140, %v253
    %255 = vmatmul.bf16.gmra.mxu0 %v174
    %v256 = vpop.f32.mrf.mxu0
    %v257 = vadd.f32 %v140, %v256
    %v258 = vpop.f32.mrf.mxu0
    %v259 = vadd.f32 %v140, %v258
    %260 = vmatmul.bf16.gmra.mxu0 %v177
    %v261 = vpop.f32.mrf.mxu0
    %v262 = vadd.f32 %v140, %v261
    %v263 = vpop.f32.mrf.mxu0
    %v264 = vadd.f32 %v140, %v263
    %265 = vdwg.mxu0
    %266 = vmatpush.bf16.msra.mxu0 0
    %267 = vmatpush.bf16.msra.mxu0 0
    %268 = vmatpush.bf16.msra.mxu0 0
    %269 = vmatpush.bf16.msra.mxu0 0
    %270 = vmatpush.bf16.msra.mxu0 0
    %271 = vmatpush.bf16.msra.mxu0 0
    %272 = vmatpush.bf16.msra.mxu0 0
    %273 = vmatpush.bf16.msra.mxu0 %v161
    %274 = vmatmul.bf16.gmra.mxu0 %v168
    %v275 = vpop.f32.mrf.mxu0
    %v276 = vadd.f32 %v141, %v275
    %v277 = vpop.f32.mrf.mxu0
    %v278 = vadd.f32 %v141, %v277
    %279 = vmatmul.bf16.gmra.mxu0 %v171
    %v280 = vpop.f32.mrf.mxu0
    %v281 = vadd.f32 %v141, %v280
    %v282 = vpop.f32.mrf.mxu0
    %v283 = vadd.f32 %v141, %v282
    %284 = vmatmul.bf16.gmra.mxu0 %v174
    %v285 = vpop.f32.mrf.mxu0
    %v286 = vadd.f32 %v141, %v285
    %v287 = vpop.f32.mrf.mxu0
    %v288 = vadd.f32 %v141, %v287
    %289 = vmatmul.bf16.gmra.mxu0 %v177
    %v290 = vpop.f32.mrf.mxu0
    %v291 = vadd.f32 %v141, %v290
    %v292 = vpop.f32.mrf.mxu0
    %v293 = vadd.f32 %v141, %v292
    %294 = vdwg.mxu0
    %v295 = vmax.f32 %v189, 0.0
    %v296 = vmax.f32 %v218, 0.0
    %v297 = vmax.f32 %v247, 0.0
    %v298 = vmax.f32 %v276, 0.0
    %v299 = vmax.f32 %v191, 0.0
    %v300 = vmax.f32 %v220, 0.0
    %v301 = vmax.f32 %v249, 0.0
    %v302 = vmax.f32 %v278, 0.0
    %v303 = vmax.f32 %v194, 0.0
    %v304 = vmax.f32 %v223, 0.0
    %v305 = vmax.f32 %v252, 0.0
    %v306 = vmax.f32 %v281, 0.0
    %v307 = vmax.f32 %v196, 0.0
    %v308 = vmax.f32 %v225, 0.0
    %v309 = vmax.f32 %v254, 0.0
    %v310 = vmax.f32 %v283, 0.0
    %v311 = vmax.f32 %v199, 0.0
    %v312 = vmax.f32 %v228, 0.0
    %v313 = vmax.f32 %v257, 0.0
    %v314 = vmax.f32 %v286, 0.0
    %v315 = vmax.f32 %v201, 0.0
    %v316 = vmax.f32 %v230, 0.0
    %v317 = vmax.f32 %v259, 0.0
    %v318 = vmax.f32 %v288, 0.0
    %v319 = vmax.f32 %v204, 0.0
    %v320 = vmax.f32 %v233, 0.0
    %v321 = vmax.f32 %v262, 0.0
    %v322 = vmax.f32 %v291, 0.0
    %v323 = vmax.f32 %v206, 0.0
    %v324 = vmax.f32 %v235, 0.0
    %v325 = vmax.f32 %v264, 0.0
    %v326 = vmax.f32 %v293, 0.0
    %v327 = vpack.c.bf16 %v299, %v295
    %v328 = vpack.c.bf16 %v300, %v296
    %v329 = vpack.c.bf16 %v307, %v303
    %v330 = vpack.c.bf16 %v308, %v304
    %v331 = vpack.c.bf16 %v315, %v311
    %v332 = vpack.c.bf16 %v316, %v312
    %v333 = vpack.c.bf16 %v323, %v319
    %v334 = vpack.c.bf16 %v324, %v320
    %v335 = vpack.c.bf16 %v301, %v297
    %v336 = vpack.c.bf16 %v302, %v298
    %v337 = vpack.c.bf16 %v309, %v305
    %v338 = vpack.c.bf16 %v310, %v306
    %v339 = vpack.c.bf16 %v317, %v313
    %v340 = vpack.c.bf16 %v318, %v314
    %v341 = vpack.c.bf16 %v325, %v321
    %v342 = vpack.c.bf16 %v326, %v322
    %v343 = vld [vmem:[#allocation2] sm:$0xff]
    %v344 = vld [vmem:[#allocation2 + $0x8] sm:$0xff]
    %v345 = vld [vmem:[#allocation2 + $0x10] sm:$0xff]
    %v346 = vld [vmem:[#allocation2 + $0x18] sm:$0xff]
    %v347 = vld [vmem:[#allocation2 + $0x20] sm:$0xff]
    %v348 = vld [vmem:[#allocation2 + $0x28] sm:$0xff]
    %v349 = vld [vmem:[#allocation2 + $0x30] sm:$0xff]
    %v350 = vld [vmem:[#allocation2 + $0x38] sm:$0xff]
    %v351 = vld [vmem:[#allocation2 + $0x40] sm:$0xff]
    %v352 = vld [vmem:[#allocation2 + $0x48] sm:$0xff]
    %v353 = vld [vmem:[#allocation2 + $0x50] sm:$0xff]
    %v354 = vld [vmem:[#allocation2 + $0x58] sm:$0xff]
    %v355 = vld [vmem:[#allocation2 + $0x60] sm:$0xff]
    %v356 = vld [vmem:[#allocation2 + $0x68] sm:$0xff]
    %v357 = vld [vmem:[#allocation2 + $0x70] sm:$0xff]
    %v358 = vld [vmem:[#allocation2 + $0x78] sm:$0xff]
    %v359 = vld [vmem:[#allocation2 + $0x80] sm:$0xff]
    %v360 = vld [vmem:[#allocation2 + $0x88] sm:$0xff]
    %v361 = vld [vmem:[#allocation2 + $0x90] sm:$0xff]
    %v362 = vld [vmem:[#allocation2 + $0x98] sm:$0xff]
    %v363 = vld [vmem:[#allocation2 + $0xa0] sm:$0xff]
    %v364 = vld [vmem:[#allocation2 + $0xa8] sm:$0xff]
    %v365 = vld [vmem:[#allocation2 + $0xb0] sm:$0xff]
    %v366 = vld [vmem:[#allocation2 + $0xb8] sm:$0xff]
    %v367 = vld [vmem:[#allocation2 + $0xc0] sm:$0xff]
    %v368 = vld [vmem:[#allocation2 + $0xc8] sm:$0xff]
    %v369 = vld [vmem:[#allocation2 + $0xd0] sm:$0xff]
    %v370 = vld [vmem:[#allocation2 + $0xd8] sm:$0xff]
    %v371 = vld [vmem:[#allocation2 + $0xe0] sm:$0xff]
    %v372 = vld [vmem:[#allocation2 + $0xe8] sm:$0xff]
    %v373 = vld [vmem:[#allocation2 + $0xf0] sm:$0xff]
    %v374 = vld [vmem:[#allocation2 + $0xf8] sm:$0xff]
    %v375 = vld [vmem:[%s5] sm:$0x3]
    %v377 = vperm.slane %v375, 0
    %v378 = vperm.slane %v375, 1
    %v413 = vunpack.c.l.b16 %v343
    %v414 = vunpack.c.h.b16 %v343
    %v415 = vunpack.c.l.b16 %v344
    %v416 = vunpack.c.h.b16 %v344
    %v417 = vunpack.c.l.b16 %v345
    %v418 = vunpack.c.h.b16 %v345
    %v419 = vunpack.c.l.b16 %v346
    %v420 = vunpack.c.h.b16 %v346
    %v421 = vunpack.c.l.b16 %v347
    %v422 = vunpack.c.h.b16 %v347
    %v423 = vunpack.c.l.b16 %v348
    %v424 = vunpack.c.h.b16 %v348
    %v425 = vunpack.c.l.b16 %v349
    %v426 = vunpack.c.h.b16 %v349
    %v427 = vunpack.c.l.b16 %v350
    %v428 = vunpack.c.h.b16 %v350
    %v429 = vunpack.c.l.b16 %v351
    %v430 = vunpack.c.h.b16 %v351
    %v431 = vunpack.c.l.b16 %v352
    %v432 = vunpack.c.h.b16 %v352
    %v433 = vunpack.c.l.b16 %v353
    %v434 = vunpack.c.h.b16 %v353
    %v435 = vunpack.c.l.b16 %v354
    %v436 = vunpack.c.h.b16 %v354
    %v437 = vunpack.c.l.b16 %v355
    %v438 = vunpack.c.h.b16 %v355
    %v439 = vunpack.c.l.b16 %v356
    %v440 = vunpack.c.h.b16 %v356
    %v441 = vunpack.c.l.b16 %v357
    %v442 = vunpack.c.h.b16 %v357
    %v443 = vunpack.c.l.b16 %v358
    %v444 = vunpack.c.h.b16 %v358
    %v445 = vunpack.c.l.b16 %v359
    %v446 = vunpack.c.h.b16 %v359
    %v447 = vunpack.c.l.b16 %v360
    %v448 = vunpack.c.h.b16 %v360
    %v449 = vunpack.c.l.b16 %v361
    %v450 = vunpack.c.h.b16 %v361
    %v451 = vunpack.c.l.b16 %v362
    %v452 = vunpack.c.h.b16 %v362
    %v453 = vunpack.c.l.b16 %v363
    %v454 = vunpack.c.h.b16 %v363
    %v455 = vunpack.c.l.b16 %v364
    %v456 = vunpack.c.h.b16 %v364
    %v457 = vunpack.c.l.b16 %v365
    %v458 = vunpack.c.h.b16 %v365
    %v459 = vunpack.c.l.b16 %v366
    %v460 = vunpack.c.h.b16 %v366
    %v461 = vunpack.c.l.b16 %v367
    %v462 = vunpack.c.h.b16 %v367
    %v463 = vunpack.c.l.b16 %v368
    %v464 = vunpack.c.h.b16 %v368
    %v465 = vunpack.c.l.b16 %v369
    %v466 = vunpack.c.h.b16 %v369
    %v467 = vunpack.c.l.b16 %v370
    %v468 = vunpack.c.h.b16 %v370
    %v469 = vunpack.c.l.b16 %v371
    %v470 = vunpack.c.h.b16 %v371
    %v471 = vunpack.c.l.b16 %v372
    %v472 = vunpack.c.h.b16 %v372
    %v473 = vunpack.c.l.b16 %v373
    %v474 = vunpack.c.h.b16 %v373
    %v475 = vunpack.c.l.b16 %v374
    %v476 = vunpack.c.h.b16 %v374
    %v477 = vpack.c.b16 %v415, %v413
    %v478 = vpack.c.b16 %v416, %v414
    %v479 = vpack.c.b16 %v419, %v417
    %v480 = vpack.c.b16 %v420, %v418
    %v481 = vpack.c.b16 %v423, %v421
    %v482 = vpack.c.b16 %v424, %v422
    %v483 = vpack.c.b16 %v427, %v425
    %v484 = vpack.c.b16 %v428, %v426
    %v485 = vpack.c.b16 %v431, %v429
    %v486 = vpack.c.b16 %v432, %v430
    %v487 = vpack.c.b16 %v435, %v433
    %v488 = vpack.c.b16 %v436, %v434
    %v489 = vpack.c.b16 %v439, %v437
    %v490 = vpack.c.b16 %v440, %v438
    %v491 = vpack.c.b16 %v443, %v441
    %v492 = vpack.c.b16 %v444, %v442
    %v493 = vpack.c.b16 %v447, %v445
    %v494 = vpack.c.b16 %v448, %v446
    %v495 = vpack.c.b16 %v451, %v449
    %v496 = vpack.c.b16 %v452, %v450
    %v497 = vpack.c.b16 %v455, %v453
    %v498 = vpack.c.b16 %v456, %v454
    %v499 = vpack.c.b16 %v459, %v457
    %v500 = vpack.c.b16 %v460, %v458
    %v501 = vpack.c.b16 %v463, %v461
    %v502 = vpack.c.b16 %v464, %v462
    %v503 = vpack.c.b16 %v467, %v465
    %v504 = vpack.c.b16 %v468, %v466
    %v505 = vpack.c.b16 %v471, %v469
    %v506 = vpack.c.b16 %v472, %v470
    %v507 = vpack.c.b16 %v475, %v473
    %v508 = vpack.c.b16 %v476, %v474
    %541 = vmatpush.bf16.msra.mxu0 %v491
    %542 = vmatpush.bf16.msra.mxu0 %v489
    %543 = vmatpush.bf16.msra.mxu0 %v487
    %544 = vmatpush.bf16.msra.mxu0 %v485
    %545 = vmatpush.bf16.msra.mxu0 %v483
    %546 = vmatpush.bf16.msra.mxu0 %v481
    %547 = vmatpush.bf16.msra.mxu0 %v479
    %548 = vmatpush.bf16.msra.mxu0 %v477
    %549 = vmatmul.bf16.gmra.mxu0 %v327
    %v550 = vpop.f32.mrf.mxu0
    %v551 = vadd.f32 %v377, %v550
    %v552 = vpop.f32.mrf.mxu0
    %v553 = vadd.f32 %v377, %v552
    %554 = vmatmul.bf16.gmra.mxu0 %v329
    %v555 = vpop.f32.mrf.mxu0
    %v556 = vadd.f32 %v377, %v555
    %v557 = vpop.f32.mrf.mxu0
    %v558 = vadd.f32 %v377, %v557
    %559 = vmatmul.bf16.gmra.mxu0 %v331
    %v560 = vpop.f32.mrf.mxu0
    %v561 = vadd.f32 %v377, %v560
    %v562 = vpop.f32.mrf.mxu0
    %v563 = vadd.f32 %v377, %v562
    %564 = vmatmul.bf16.gmra.mxu0 %v333
    %v565 = vpop.f32.mrf.mxu0
    %v566 = vadd.f32 %v377, %v565
    %v567 = vpop.f32.mrf.mxu0
    %v568 = vadd.f32 %v377, %v567
    %569 = vdwg.mxu0
    %570 = vmatpush.bf16.msra.mxu0 %v507
    %571 = vmatpush.bf16.msra.mxu0 %v505
    %572 = vmatpush.bf16.msra.mxu0 %v503
    %573 = vmatpush.bf16.msra.mxu0 %v501
    %574 = vmatpush.bf16.msra.mxu0 %v499
    %575 = vmatpush.bf16.msra.mxu0 %v497
    %576 = vmatpush.bf16.msra.mxu0 %v495
    %577 = vmatpush.bf16.msra.mxu0 %v493
    %578 = vmatmul.bf16.gmra.mxu0 %v328
    %v579 = vpop.f32.mrf.mxu0
    %v580 = vadd.f32 %v551, %v579
    %v581 = vpop.f32.mrf.mxu0
    %v582 = vadd.f32 %v553, %v581
    %583 = vmatmul.bf16.gmra.mxu0 %v330
    %v584 = vpop.f32.mrf.mxu0
    %v585 = vadd.f32 %v556, %v584
    %v586 = vpop.f32.mrf.mxu0
    %v587 = vadd.f32 %v558, %v586
    %588 = vmatmul.bf16.gmra.mxu0 %v332
    %v589 = vpop.f32.mrf.mxu0
    %v590 = vadd.f32 %v561, %v589
    %v591 = vpop.f32.mrf.mxu0
    %v592 = vadd.f32 %v563, %v591
    %593 = vmatmul.bf16.gmra.mxu0 %v334
    %v594 = vpop.f32.mrf.mxu0
    %v595 = vadd.f32 %v566, %v594
    %v596 = vpop.f32.mrf.mxu0
    %v597 = vadd.f32 %v568, %v596
    %598 = vdwg.mxu0
    %599 = vmatpush.bf16.msra.mxu0 %v492
    %600 = vmatpush.bf16.msra.mxu0 %v490
    %601 = vmatpush.bf16.msra.mxu0 %v488
    %602 = vmatpush.bf16.msra.mxu0 %v486
    %603 = vmatpush.bf16.msra.mxu0 %v484
    %604 = vmatpush.bf16.msra.mxu0 %v482
    %605 = vmatpush.bf16.msra.mxu0 %v480
    %606 = vmatpush.bf16.msra.mxu0 %v478
    %607 = vmatmul.bf16.gmra.mxu0 %v327
    %v608 = vpop.f32.mrf.mxu0
    %v609 = vadd.f32 %v378, %v608
    %v610 = vpop.f32.mrf.mxu0
    %v611 = vadd.f32 %v378, %v610
    %612 = vmatmul.bf16.gmra.mxu0 %v329
    %v613 = vpop.f32.mrf.mxu0
    %v614 = vadd.f32 %v378, %v613
    %v615 = vpop.f32.mrf.mxu0
    %v616 = vadd.f32 %v378, %v615
    %617 = vmatmul.bf16.gmra.mxu0 %v331
    %v618 = vpop.f32.mrf.mxu0
    %v619 = vadd.f32 %v378, %v618
    %v620 = vpop.f32.mrf.mxu0
    %v621 = vadd.f32 %v378, %v620
    %622 = vmatmul.bf16.gmra.mxu0 %v333
    %v623 = vpop.f32.mrf.mxu0
    %v624 = vadd.f32 %v378, %v623
    %v625 = vpop.f32.mrf.mxu0
    %v626 = vadd.f32 %v378, %v625
    %627 = vdwg.mxu0
    %628 = vmatpush.bf16.msra.mxu0 %v508
    %629 = vmatpush.bf16.msra.mxu0 %v506
    %630 = vmatpush.bf16.msra.mxu0 %v504
    %631 = vmatpush.bf16.msra.mxu0 %v502
    %632 = vmatpush.bf16.msra.mxu0 %v500
    %633 = vmatpush.bf16.msra.mxu0 %v498
    %634 = vmatpush.bf16.msra.mxu0 %v496
    %635 = vmatpush.bf16.msra.mxu0 %v494
    %636 = vmatmul.bf16.gmra.mxu0 %v328
    %v637 = vpop.f32.mrf.mxu0
    %v638 = vadd.f32 %v609, %v637
    %v639 = vpop.f32.mrf.mxu0
    %v640 = vadd.f32 %v611, %v639
    %641 = vmatmul.bf16.gmra.mxu0 %v330
    %v642 = vpop.f32.mrf.mxu0
    %v643 = vadd.f32 %v614, %v642
    %v644 = vpop.f32.mrf.mxu0
    %v645 = vadd.f32 %v616, %v644
    %646 = vmatmul.bf16.gmra.mxu0 %v332
    %v647 = vpop.f32.mrf.mxu0
    %v648 = vadd.f32 %v619, %v647
    %v649 = vpop.f32.mrf.mxu0
    %v650 = vadd.f32 %v621, %v649
    %651 = vmatmul.bf16.gmra.mxu0 %v334
    %v652 = vpop.f32.mrf.mxu0
    %v653 = vadd.f32 %v624, %v652
    %v654 = vpop.f32.mrf.mxu0
    %v655 = vadd.f32 %v626, %v654
    %656 = vdwg.mxu0
    %v657 = vmax.f32 %v580, 0.0
    %v658 = vmax.f32 %v638, 0.0
    %v659 = vmax.f32 %v582, 0.0
    %v660 = vmax.f32 %v640, 0.0
    %v661 = vmax.f32 %v585, 0.0
    %v662 = vmax.f32 %v643, 0.0
    %v663 = vmax.f32 %v587, 0.0
    %v664 = vmax.f32 %v645, 0.0
    %v665 = vmax.f32 %v590, 0.0
    %v666 = vmax.f32 %v648, 0.0
    %v667 = vmax.f32 %v592, 0.0
    %v668 = vmax.f32 %v650, 0.0
    %v669 = vmax.f32 %v595, 0.0
    %v670 = vmax.f32 %v653, 0.0
    %v671 = vmax.f32 %v597, 0.0
    %v672 = vmax.f32 %v655, 0.0
    %v673 = vld [vmem:[#allocation4] sm:$0xff]
    %v674 = vld [vmem:[#allocation4 + $0x8] sm:$0xff]
    %v675 = vld [vmem:[#allocation4 + $0x10] sm:$0xff]
    %v676 = vld [vmem:[#allocation4 + $0x18] sm:$0xff]
    %v677 = vld [vmem:[#allocation4 + $0x20] sm:$0xff]
    %v678 = vld [vmem:[#allocation4 + $0x28] sm:$0xff]
    %v679 = vld [vmem:[#allocation4 + $0x30] sm:$0xff]
    %v680 = vld [vmem:[#allocation4 + $0x38] sm:$0xff]
    %v681 = vld [vmem:[#allocation4 + $0x40] sm:$0xff]
    %v682 = vld [vmem:[#allocation4 + $0x48] sm:$0xff]
    %v683 = vld [vmem:[#allocation4 + $0x50] sm:$0xff]
    %v684 = vld [vmem:[#allocation4 + $0x58] sm:$0xff]
    %v685 = vld [vmem:[#allocation4 + $0x60] sm:$0xff]
    %v686 = vld [vmem:[#allocation4 + $0x68] sm:$0xff]
    %v687 = vld [vmem:[#allocation4 + $0x70] sm:$0xff]
    %v688 = vld [vmem:[#allocation4 + $0x78] sm:$0xff]
    %v689 = vld [vmem:[#allocation4 + $0x80] sm:$0xff]
    %v690 = vld [vmem:[#allocation4 + $0x88] sm:$0xff]
    %v691 = vld [vmem:[#allocation4 + $0x90] sm:$0xff]
    %v692 = vld [vmem:[#allocation4 + $0x98] sm:$0xff]
    %v693 = vld [vmem:[#allocation4 + $0xa0] sm:$0xff]
    %v694 = vld [vmem:[#allocation4 + $0xa8] sm:$0xff]
    %v695 = vld [vmem:[#allocation4 + $0xb0] sm:$0xff]
    %v696 = vld [vmem:[#allocation4 + $0xb8] sm:$0xff]
    %v697 = vld [vmem:[#allocation4 + $0xc0] sm:$0xff]
    %v698 = vld [vmem:[#allocation4 + $0xc8] sm:$0xff]
    %v699 = vld [vmem:[#allocation4 + $0xd0] sm:$0xff]
    %v700 = vld [vmem:[#allocation4 + $0xd8] sm:$0xff]
    %v701 = vld [vmem:[#allocation4 + $0xe0] sm:$0xff]
    %v702 = vld [vmem:[#allocation4 + $0xe8] sm:$0xff]
    %v703 = vld [vmem:[#allocation4 + $0xf0] sm:$0xff]
    %v704 = vld [vmem:[#allocation4 + $0xf8] sm:$0xff]
    %v705 = vld [vmem:[%s7] sm:$0x3]
    %v707 = vperm.slane %v705, 0
    %v708 = vperm.slane %v705, 1
    %v743 = vunpack.c.l.b16 %v673
    %v744 = vunpack.c.h.b16 %v673
    %v745 = vunpack.c.l.b16 %v674
    %v746 = vunpack.c.h.b16 %v674
    %v747 = vunpack.c.l.b16 %v675
    %v748 = vunpack.c.h.b16 %v675
    %v749 = vunpack.c.l.b16 %v676
    %v750 = vunpack.c.h.b16 %v676
    %v751 = vunpack.c.l.b16 %v677
    %v752 = vunpack.c.h.b16 %v677
    %v753 = vunpack.c.l.b16 %v678
    %v754 = vunpack.c.h.b16 %v678
    %v755 = vunpack.c.l.b16 %v679
    %v756 = vunpack.c.h.b16 %v679
    %v757 = vunpack.c.l.b16 %v680
    %v758 = vunpack.c.h.b16 %v680
    %v759 = vunpack.c.l.b16 %v681
    %v760 = vunpack.c.h.b16 %v681
    %v761 = vunpack.c.l.b16 %v682
    %v762 = vunpack.c.h.b16 %v682
    %v763 = vunpack.c.l.b16 %v683
    %v764 = vunpack.c.h.b16 %v683
    %v765 = vunpack.c.l.b16 %v684
    %v766 = vunpack.c.h.b16 %v684
    %v767 = vunpack.c.l.b16 %v685
    %v768 = vunpack.c.h.b16 %v685
    %v769 = vunpack.c.l.b16 %v686
    %v770 = vunpack.c.h.b16 %v686
    %v771 = vunpack.c.l.b16 %v687
    %v772 = vunpack.c.h.b16 %v687
    %v773 = vunpack.c.l.b16 %v688
    %v774 = vunpack.c.h.b16 %v688
    %v775 = vunpack.c.l.b16 %v689
    %v776 = vunpack.c.h.b16 %v689
    %v777 = vunpack.c.l.b16 %v690
    %v778 = vunpack.c.h.b16 %v690
    %v779 = vunpack.c.l.b16 %v691
    %v780 = vunpack.c.h.b16 %v691
    %v781 = vunpack.c.l.b16 %v692
    %v782 = vunpack.c.h.b16 %v692
    %v783 = vunpack.c.l.b16 %v693
    %v784 = vunpack.c.h.b16 %v693
    %v785 = vunpack.c.l.b16 %v694
    %v786 = vunpack.c.h.b16 %v694
    %v787 = vunpack.c.l.b16 %v695
    %v788 = vunpack.c.h.b16 %v695
    %v789 = vunpack.c.l.b16 %v696
    %v790 = vunpack.c.h.b16 %v696
    %v791 = vunpack.c.l.b16 %v697
    %v792 = vunpack.c.h.b16 %v697
    %v793 = vunpack.c.l.b16 %v698
    %v794 = vunpack.c.h.b16 %v698
    %v795 = vunpack.c.l.b16 %v699
    %v796 = vunpack.c.h.b16 %v699
    %v797 = vunpack.c.l.b16 %v700
    %v798 = vunpack.c.h.b16 %v700
    %v799 = vunpack.c.l.b16 %v701
    %v800 = vunpack.c.h.b16 %v701
    %v801 = vunpack.c.l.b16 %v702
    %v802 = vunpack.c.h.b16 %v702
    %v803 = vunpack.c.l.b16 %v703
    %v804 = vunpack.c.h.b16 %v703
    %v805 = vunpack.c.l.b16 %v704
    %v806 = vunpack.c.h.b16 %v704
    %v807 = vpack.c.b16 %v745, %v743
    %v808 = vpack.c.b16 %v746, %v744
    %v809 = vpack.c.b16 %v749, %v747
    %v810 = vpack.c.b16 %v750, %v748
    %v811 = vpack.c.b16 %v753, %v751
    %v812 = vpack.c.b16 %v754, %v752
    %v813 = vpack.c.b16 %v757, %v755
    %v814 = vpack.c.b16 %v758, %v756
    %v815 = vpack.c.b16 %v761, %v759
    %v816 = vpack.c.b16 %v762, %v760
    %v817 = vpack.c.b16 %v765, %v763
    %v818 = vpack.c.b16 %v766, %v764
    %v819 = vpack.c.b16 %v769, %v767
    %v820 = vpack.c.b16 %v770, %v768
    %v821 = vpack.c.b16 %v773, %v771
    %v822 = vpack.c.b16 %v774, %v772
    %v823 = vpack.c.b16 %v777, %v775
    %v824 = vpack.c.b16 %v778, %v776
    %v825 = vpack.c.b16 %v781, %v779
    %v826 = vpack.c.b16 %v782, %v780
    %v827 = vpack.c.b16 %v785, %v783
    %v828 = vpack.c.b16 %v786, %v784
    %v829 = vpack.c.b16 %v789, %v787
    %v830 = vpack.c.b16 %v790, %v788
    %v831 = vpack.c.b16 %v793, %v791
    %v832 = vpack.c.b16 %v794, %v792
    %v833 = vpack.c.b16 %v797, %v795
    %v834 = vpack.c.b16 %v798, %v796
    %v835 = vpack.c.b16 %v801, %v799
    %v836 = vpack.c.b16 %v802, %v800
    %v837 = vpack.c.b16 %v805, %v803
    %v838 = vpack.c.b16 %v806, %v804
    %871 = vmatpush.bf16.msra.mxu0 %v821
    %872 = vmatpush.bf16.msra.mxu0 %v819
    %873 = vmatpush.bf16.msra.mxu0 %v817
    %874 = vmatpush.bf16.msra.mxu0 %v815
    %875 = vmatpush.bf16.msra.mxu0 %v813
    %876 = vmatpush.bf16.msra.mxu0 %v811
    %877 = vmatpush.bf16.msra.mxu0 %v809
    %878 = vmatpush.bf16.msra.mxu0 %v807
    %879 = vmatmul.bf16.gmra.mxu0 %v335
    %v880 = vpop.f32.mrf.mxu0
    %v881 = vadd.f32 %v707, %v880
    %v882 = vpop.f32.mrf.mxu0
    %v883 = vadd.f32 %v707, %v882
    %884 = vmatmul.bf16.gmra.mxu0 %v337
    %v885 = vpop.f32.mrf.mxu0
    %v886 = vadd.f32 %v707, %v885
    %v887 = vpop.f32.mrf.mxu0
    %v888 = vadd.f32 %v707, %v887
    %889 = vmatmul.bf16.gmra.mxu0 %v339
    %v890 = vpop.f32.mrf.mxu0
    %v891 = vadd.f32 %v707, %v890
    %v892 = vpop.f32.mrf.mxu0
    %v893 = vadd.f32 %v707, %v892
    %894 = vmatmul.bf16.gmra.mxu0 %v341
    %v895 = vpop.f32.mrf.mxu0
    %v896 = vadd.f32 %v707, %v895
    %v897 = vpop.f32.mrf.mxu0
    %v898 = vadd.f32 %v707, %v897
    %899 = vdwg.mxu0
    %900 = vmatpush.bf16.msra.mxu0 %v837
    %901 = vmatpush.bf16.msra.mxu0 %v835
    %902 = vmatpush.bf16.msra.mxu0 %v833
    %903 = vmatpush.bf16.msra.mxu0 %v831
    %904 = vmatpush.bf16.msra.mxu0 %v829
    %905 = vmatpush.bf16.msra.mxu0 %v827
    %906 = vmatpush.bf16.msra.mxu0 %v825
    %907 = vmatpush.bf16.msra.mxu0 %v823
    %908 = vmatmul.bf16.gmra.mxu0 %v336
    %v909 = vpop.f32.mrf.mxu0
    %v910 = vadd.f32 %v881, %v909
    %v911 = vpop.f32.mrf.mxu0
    %v912 = vadd.f32 %v883, %v911
    %913 = vmatmul.bf16.gmra.mxu0 %v338
    %v914 = vpop.f32.mrf.mxu0
    %v915 = vadd.f32 %v886, %v914
    %v916 = vpop.f32.mrf.mxu0
    %v917 = vadd.f32 %v888, %v916
    %918 = vmatmul.bf16.gmra.mxu0 %v340
    %v919 = vpop.f32.mrf.mxu0
    %v920 = vadd.f32 %v891, %v919
    %v921 = vpop.f32.mrf.mxu0
    %v922 = vadd.f32 %v893, %v921
    %923 = vmatmul.bf16.gmra.mxu0 %v342
    %v924 = vpop.f32.mrf.mxu0
    %v925 = vadd.f32 %v896, %v924
    %v926 = vpop.f32.mrf.mxu0
    %v927 = vadd.f32 %v898, %v926
    %928 = vdwg.mxu0
    %929 = vmatpush.bf16.msra.mxu0 %v822
    %930 = vmatpush.bf16.msra.mxu0 %v820
    %931 = vmatpush.bf16.msra.mxu0 %v818
    %932 = vmatpush.bf16.msra.mxu0 %v816
    %933 = vmatpush.bf16.msra.mxu0 %v814
    %934 = vmatpush.bf16.msra.mxu0 %v812
    %935 = vmatpush.bf16.msra.mxu0 %v810
    %936 = vmatpush.bf16.msra.mxu0 %v808
    %937 = vmatmul.bf16.gmra.mxu0 %v335
    %v938 = vpop.f32.mrf.mxu0
    %v939 = vadd.f32 %v708, %v938
    %v940 = vpop.f32.mrf.mxu0
    %v941 = vadd.f32 %v708, %v940
    %942 = vmatmul.bf16.gmra.mxu0 %v337
    %v943 = vpop.f32.mrf.mxu0
    %v944 = vadd.f32 %v708, %v943
    %v945 = vpop.f32.mrf.mxu0
    %v946 = vadd.f32 %v708, %v945
    %947 = vmatmul.bf16.gmra.mxu0 %v339
    %v948 = vpop.f32.mrf.mxu0
    %v949 = vadd.f32 %v708, %v948
    %v950 = vpop.f32.mrf.mxu0
    %v951 = vadd.f32 %v708, %v950
    %952 = vmatmul.bf16.gmra.mxu0 %v341
    %v953 = vpop.f32.mrf.mxu0
    %v954 = vadd.f32 %v708, %v953
    %v955 = vpop.f32.mrf.mxu0
    %v956 = vadd.f32 %v708, %v955
    %957 = vdwg.mxu0
    %958 = vmatpush.bf16.msra.mxu0 %v838
    %959 = vmatpush.bf16.msra.mxu0 %v836
    %960 = vmatpush.bf16.msra.mxu0 %v834
    %961 = vmatpush.bf16.msra.mxu0 %v832
    %962 = vmatpush.bf16.msra.mxu0 %v830
    %963 = vmatpush.bf16.msra.mxu0 %v828
    %964 = vmatpush.bf16.msra.mxu0 %v826
    %965 = vmatpush.bf16.msra.mxu0 %v824
    %966 = vmatmul.bf16.gmra.mxu0 %v336
    %v967 = vpop.f32.mrf.mxu0
    %v968 = vadd.f32 %v939, %v967
    %v969 = vpop.f32.mrf.mxu0
    %v970 = vadd.f32 %v941, %v969
    %971 = vmatmul.bf16.gmra.mxu0 %v338
    %v972 = vpop.f32.mrf.mxu0
    %v973 = vadd.f32 %v944, %v972
    %v974 = vpop.f32.mrf.mxu0
    %v975 = vadd.f32 %v946, %v974
    %976 = vmatmul.bf16.gmra.mxu0 %v340
    %v977 = vpop.f32.mrf.mxu0
    %v978 = vadd.f32 %v949, %v977
    %v979 = vpop.f32.mrf.mxu0
    %v980 = vadd.f32 %v951, %v979
    %981 = vmatmul.bf16.gmra.mxu0 %v342
    %v982 = vpop.f32.mrf.mxu0
    %v983 = vadd.f32 %v954, %v982
    %v984 = vpop.f32.mrf.mxu0
    %v985 = vadd.f32 %v956, %v984
    %986 = vdwg.mxu0
    %v987 = vmax.f32 %v910, 0.0
    %v988 = vmax.f32 %v968, 0.0
    %v989 = vmax.f32 %v912, 0.0
    %v990 = vmax.f32 %v970, 0.0
    %v991 = vmax.f32 %v915, 0.0
    %v992 = vmax.f32 %v973, 0.0
    %v993 = vmax.f32 %v917, 0.0
    %v994 = vmax.f32 %v975, 0.0
    %v995 = vmax.f32 %v920, 0.0
    %v996 = vmax.f32 %v978, 0.0
    %v997 = vmax.f32 %v922, 0.0
    %v998 = vmax.f32 %v980, 0.0
    %v999 = vmax.f32 %v925, 0.0
    %v1000 = vmax.f32 %v983, 0.0
    %v1001 = vmax.f32 %v927, 0.0
    %v1002 = vmax.f32 %v985, 0.0
    %v1003 = vld [vmem:[%s8] sm:$0x3]
    %v1005 = vperm.slane %v1003, 0
    %v1006 = vperm.slane %v1003, 1
    %v1009 = vmul.f32 %v657, %v1005
    %v1010 = vmul.f32 %v658, %v1006
    %v1011 = vmul.f32 %v659, %v1005
    %v1012 = vmul.f32 %v660, %v1006
    %v1013 = vmul.f32 %v661, %v1005
    %v1014 = vmul.f32 %v662, %v1006
    %v1015 = vmul.f32 %v663, %v1005
    %v1016 = vmul.f32 %v664, %v1006
    %v1017 = vmul.f32 %v665, %v1005
    %v1018 = vmul.f32 %v666, %v1006
    %v1019 = vmul.f32 %v667, %v1005
    %v1020 = vmul.f32 %v668, %v1006
    %v1021 = vmul.f32 %v669, %v1005
    %v1022 = vmul.f32 %v670, %v1006
    %v1023 = vmul.f32 %v671, %v1005
    %v1024 = vmul.f32 %v672, %v1006
    %v1025 = vadd.f32 %v1009, %v1010
    %1026 = vadd.xlane.f32.xlu0 %v1025
    %v1027 = vpop.xlane.xlu0 %1026
    %v1028 = vadd.f32 %v1011, %v1012
    %1029 = vadd.xlane.f32.xlu0 %v1028
    %v1030 = vpop.xlane.xlu0 %1029
    %v1031 = vadd.f32 %v1013, %v1014
    %1032 = vadd.xlane.f32.xlu0 %v1031
    %v1033 = vpop.xlane.xlu0 %1032
    %v1034 = vadd.f32 %v1015, %v1016
    %1035 = vadd.xlane.f32.xlu0 %v1034
    %v1036 = vpop.xlane.xlu0 %1035
    %v1037 = vadd.f32 %v1017, %v1018
    %1038 = vadd.xlane.f32.xlu0 %v1037
    %v1039 = vpop.xlane.xlu0 %1038
    %v1040 = vadd.f32 %v1019, %v1020
    %1041 = vadd.xlane.f32.xlu0 %v1040
    %v1042 = vpop.xlane.xlu0 %1041
    %v1043 = vadd.f32 %v1021, %v1022
    %1044 = vadd.xlane.f32.xlu0 %v1043
    %v1045 = vpop.xlane.xlu0 %1044
    %v1046 = vadd.f32 %v1023, %v1024
    %1047 = vadd.xlane.f32.xlu0 %v1046
    %v1048 = vpop.xlane.xlu0 %1047
    %v1049 = vld [vmem:[%s9] sm:$0x3]
    %v1051 = vperm.slane %v1049, 0
    %v1052 = vperm.slane %v1049, 1
    %v1055 = vmul.f32 %v987, %v1051
    %v1056 = vmul.f32 %v988, %v1052
    %v1057 = vmul.f32 %v989, %v1051
    %v1058 = vmul.f32 %v990, %v1052
    %v1059 = vmul.f32 %v991, %v1051
    %v1060 = vmul.f32 %v992, %v1052
    %v1061 = vmul.f32 %v993, %v1051
    %v1062 = vmul.f32 %v994, %v1052
    %v1063 = vmul.f32 %v995, %v1051
    %v1064 = vmul.f32 %v996, %v1052
    %v1065 = vmul.f32 %v997, %v1051
    %v1066 = vmul.f32 %v998, %v1052
    %v1067 = vmul.f32 %v999, %v1051
    %v1068 = vmul.f32 %v1000, %v1052
    %v1069 = vmul.f32 %v1001, %v1051
    %v1070 = vmul.f32 %v1002, %v1052
    %v1071 = vadd.f32 %v1055, %v1056
    %1072 = vadd.xlane.f32.xlu0 %v1071
    %v1073 = vpop.xlane.xlu0 %1072
    %v1074 = vadd.f32 %v1057, %v1058
    %1075 = vadd.xlane.f32.xlu0 %v1074
    %v1076 = vpop.xlane.xlu0 %1075
    %v1077 = vadd.f32 %v1059, %v1060
    %1078 = vadd.xlane.f32.xlu0 %v1077
    %v1079 = vpop.xlane.xlu0 %1078
    %v1080 = vadd.f32 %v1061, %v1062
    %1081 = vadd.xlane.f32.xlu0 %v1080
    %v1082 = vpop.xlane.xlu0 %1081
    %v1083 = vadd.f32 %v1063, %v1064
    %1084 = vadd.xlane.f32.xlu0 %v1083
    %v1085 = vpop.xlane.xlu0 %1084
    %v1086 = vadd.f32 %v1065, %v1066
    %1087 = vadd.xlane.f32.xlu0 %v1086
    %v1088 = vpop.xlane.xlu0 %1087
    %v1089 = vadd.f32 %v1067, %v1068
    %1090 = vadd.xlane.f32.xlu0 %v1089
    %v1091 = vpop.xlane.xlu0 %1090
    %v1092 = vadd.f32 %v1069, %v1070
    %1093 = vadd.xlane.f32.xlu0 %v1092
    %v1094 = vpop.xlane.xlu0 %1093
    %vm1095 = vcmask 7168
    %v1096 = vsel %vm1095, %v1027, %v1073
    %v1097 = vsel %vm1095, %v1030, %v1076
    %v1098 = vsel %vm1095, %v1033, %v1079
    %v1099 = vsel %vm1095, %v1036, %v1082
    %v1100 = vsel %vm1095, %v1039, %v1085
    %v1101 = vsel %vm1095, %v1042, %v1088
    %v1102 = vsel %vm1095, %v1045, %v1091
    %v1103 = vsel %vm1095, %v1048, %v1094
    %v1104 = vld [vmem:[%s10] sm:$0x1]
    %v1106 = vperm.slane %v1104, 0
    %v1108 = vadd.f32 %v1096, %v1106
    %v1109 = vadd.f32 %v1097, %v1106
    %v1110 = vadd.f32 %v1098, %v1106
    %v1111 = vadd.f32 %v1099, %v1106
    %v1112 = vadd.f32 %v1100, %v1106
    %v1113 = vadd.f32 %v1101, %v1106
    %v1114 = vadd.f32 %v1102, %v1106
    %v1115 = vadd.f32 %v1103, %v1106
    %vm1116 = vcmask 15360
    %1117 = vst.msk [vmem:[%s11] sm:$0xff] %vm1116, %v1108
    %1118 = vst.msk [vmem:[%s11 + $0x8] sm:$0xff] %vm1116, %v1109
    %1119 = vst.msk [vmem:[%s11 + $0x10] sm:$0xff] %vm1116, %v1110
    %1120 = vst.msk [vmem:[%s11 + $0x18] sm:$0xff] %vm1116, %v1111
    %1121 = vst.msk [vmem:[%s11 + $0x20] sm:$0xff] %vm1116, %v1112
    %1122 = vst.msk [vmem:[%s11 + $0x28] sm:$0xff] %vm1116, %v1113
    %1123 = vst.msk [vmem:[%s11 + $0x30] sm:$0xff] %vm1116, %v1114
    %1124 = vst.msk [vmem:[%s11 + $0x38] sm:$0xff] %vm1116, %v1115
    // Predicated region
    $region54: #{qnetwork_forward.1} parent=1 // pred_check
      _
    $region55: #{qnetwork_forward.1} parent=1 // pred_check_branch
      %1126 = sbr.rel (0) target = $region57
    $region56: #{qnetwork_forward.1} parent=1 // pred_region
      _
    $region57: #{qnetwork_forward.1} parent=1 // pred_fallthru
      _
    // Predicated region
    $region58: #{qnetwork_forward.1} parent=1 // pred_check
      _
    $region59: #{qnetwork_forward.1} parent=1 // pred_check_branch
      %1128 = sbr.rel (0) target = $region61
    $region60: #{qnetwork_forward.1} parent=1 // pred_region
      _
    $region61: #{qnetwork_forward.1} parent=1 // pred_fallthru
      _
    %1129 = vsyncpa [#allocation3], 1
    %1130 = vsyncpa [#allocation5], 1

</llo_original>
